<compile_context>
chip_gen: v6e
topology: v6e:2x2x1
jax: 0.10.0
libtpu: 0.0.40
codegen_flags: <defaults>
</compile_context>

<pallas_src>
import functools

import jax
import jax.numpy as jnp
from jax.experimental import pallas as pl
from jax.experimental.pallas import tpu as pltpu


def temporal_attention_kernel(x_ref, w_ref, b_ref, m_ref, o_ref, *,
                              cq, c, bt, mxu_dtype, approx_recip):
    """One grid step = `bt` batches, fully batched on the MXU/VPU/XLU.

    x_ref: (bt, C, N) f32                  raw input block (cast in-kernel)
    w_ref: (bt*(2Cq+C), bt*C) mxu_dtype    block-diagonal [Wq;Wk;Wv] stack
    b_ref: (bt*(2Cq+C), 1) f32             stacked biases
    m_ref: (bt*Cq, bt*Cq) f32              additive mask (0 on per-batch diag
                                           blocks, -1e30 on cross-batch blocks)
    o_ref: (bt, C, N) out_dtype
    """
    n = x_ref.shape[-1]
    ncq = bt * cq

    # In-kernel cast (VPU): x reaches VMEM as plain f32 — no host-side
    # concat/pad/cast HBM pass.  (bt, C, N) -> (bt*C, N) is layout-free for
    # C % 8 == 0 (a relayout copy otherwise, still correct).
    x = x_ref[...].reshape(bt * c, n).astype(mxu_dtype)

    # All bt QKV projections + biases in ONE wide MXU matmul (f32 accumulation).
    qkv = jnp.dot(w_ref[...], x, preferred_element_type=jnp.float32) + b_ref[...]
    qkv_lo = qkv.astype(mxu_dtype)            # single cast of the whole slab
    q_lo = qkv_lo[:ncq]                       # (bt*Cq, N)
    k_lo = qkv_lo[ncq:2 * ncq]                # (bt*Cq, N)
    v_lo = qkv_lo[2 * ncq:]                   # (bt*C,  N)

    # energy[b1*Cq+i, b2*Cq+j] = sum_n k_{b1}[i,n] * q_{b2}[j,n]; all batches in
    # one contraction over N.  Cross-batch (b1 != b2) blocks are garbage and are
    # masked to -1e30 before the softmax.
    energy = jax.lax.dot_general(
        k_lo, q_lo, (((1,), (1,)), ((), ())),
        preferred_element_type=jnp.float32)   # (bt*Cq, bt*Cq) f32
    energy = energy + m_ref[...]

    # Softmax over dim=-2 (key index) for every batch at once: lanes are bt*Cq
    # wide, one XLU reduction instead of bt tiny ones.  All math stays f32.
    mx = jnp.max(energy, axis=0, keepdims=True)
    e = jnp.exp(energy - mx)
    denom = jnp.sum(e, axis=0, keepdims=True)
    attn = e * pl.reciprocal(denom, approx=approx_recip)   # EUP slot when approx

    # out = attention @ value for all batches in one matmul: the masked attention
    # is exactly block-diagonal (exp(-1e30 - mx) == 0), so cross-batch terms
    # contribute nothing.
    out = jnp.dot(attn.astype(mxu_dtype), v_lo,
                  preferred_element_type=jnp.float32)      # (bt*C, N) f32
    o_ref[...] = out.reshape(bt, c, n).astype(o_ref.dtype)


def _tpu_meta():
    """Per-generation tiling knobs: TensorCore count, per-step VMEM data budget
    and an explicit scoped-VMEM limit."""
    kind = ""
    try:
        kind = jax.devices()[0].device_kind.lower()
    except Exception:
        pass
    if "v7" in kind:
        # 2 TensorCores per chip, 64 MiB physical VMEM per TC.
        return {"num_cores": 2, "budget": 10 << 20, "vmem_limit": 32 << 20}
    if "v5 lite" in kind or "v5e" in kind or "lite" in kind:
        # 1 TC, smaller scoped default, slowest HBM.
        return {"num_cores": 1, "budget": 8 << 20, "vmem_limit": 64 << 20}
    # v6e (and default): 1 TC, 128 MiB physical VMEM.
    return {"num_cores": 1, "budget": 16 << 20, "vmem_limit": 64 << 20}


def _pick_batch_tile(batch, c, cq, n, in_bytes, out_bytes, mxu_bytes, *,
                     budget_bytes, num_cores, cap=16):
    """Largest divisor of `batch` (capped) whose per-step VMEM footprint —
    double-buffered in/out blocks + resident weight/bias/mask + in-kernel f32
    intermediates — fits the budget.  `cap` bounds the bt^2-sized block-diagonal
    weight/mask (and MXU flop waste).  The 'keep >= num_cores grid steps' shrink
    applies only on multi-TensorCore chips (v7x)."""
    o_rows = 2 * cq + c
    best = 1
    for bt in range(1, min(batch, cap) + 1):
        if batch % bt:
            continue
        blocks = 2 * bt * c * n * (in_bytes + out_bytes)           # x + out, 2x buffered
        blocks += 2 * (bt * o_rows) * (bt * c) * mxu_bytes         # block-diag weights
        blocks += 2 * (bt * o_rows) * 4 + 2 * (bt * cq) ** 2 * 4   # bias + softmax mask
        interm = bt * o_rows * n * (4 + mxu_bytes)                 # qkv f32 + lo copy
        interm += bt * c * n * (4 + mxu_bytes)                     # out_full f32 + x cast
        interm += 3 * (bt * cq) ** 2 * 4                           # energy / exp / attn
        if blocks + interm <= budget_bytes:
            best = bt
    if num_cores >= 2:
        while best > 1 and batch // best < num_cores:
            best -= 1
            while best > 1 and batch % best:
                best -= 1
    return best


def temporal_attention(x, wq, bq, wk, bk, wv, bv, *, mxu_dtype=jnp.bfloat16,
                       out_dtype=None, batch_tile=None, approx_recip=True):
    B, C, H, W = x.shape
    N = H * W
    Cq = wq.shape[0]
    assert Cq == C and wk.shape[0] == Cq and wv.shape[0] == C  # see TODO(synk)

    out_dtype = x.dtype if out_dtype is None else out_dtype
    meta = _tpu_meta()

    if batch_tile is None:
        batch_tile = _pick_batch_tile(
            B, C, Cq, N,
            in_bytes=x.dtype.itemsize,
            out_bytes=jnp.dtype(out_dtype).itemsize,
            mxu_bytes=jnp.dtype(mxu_dtype).itemsize,
            budget_bytes=meta["budget"], num_cores=meta["num_cores"])
    assert B % batch_tile == 0, "batch_tile must divide batch"
    bt = batch_tile
    O = 2 * Cq + C

    # Kernel reads raw f32 (B, C, N) blocks; reshape here is free (no HBM pass).
    # N is the full block extent, so no lane padding / post-kernel slice needed.
    x_flat = x.reshape(B, C, N)

    # Block-diagonal [Wq; Wk; Wv] stack: one (bt*O, bt*C) @ (bt*C, N) MXU push per
    # grid step does all bt batches' QKV projections.  Tiny; resident across the
    # grid (constant index_map).
    eye = jnp.eye(bt, dtype=jnp.float32)
    w_big = jnp.concatenate(
        [jnp.kron(eye, wq), jnp.kron(eye, wk), jnp.kron(eye, wv)],
        axis=0).astype(mxu_dtype)                                  # (bt*O, bt*C)
    bias_big = jnp.concatenate(
        [jnp.tile(bq, bt), jnp.tile(bk, bt), jnp.tile(bv, bt)]
    ).astype(jnp.float32)[:, None]                                 # (bt*O, 1)

    # Additive softmax mask: 0 on per-batch diagonal blocks, -1e30 elsewhere on
    # the lane-packed (bt*Cq, bt*Cq) energy.
    blk = jnp.kron(eye, jnp.ones((Cq, Cq), jnp.float32))
    mask = jnp.where(blk > 0.5, 0.0, -1e30).astype(jnp.float32)    # (bt*Cq, bt*Cq)

    kernel = functools.partial(
        temporal_attention_kernel, cq=Cq, c=C, bt=bt,
        mxu_dtype=mxu_dtype, approx_recip=approx_recip)

    out = pl.pallas_call(
        kernel,
        out_shape=jax.ShapeDtypeStruct((B, C, N), out_dtype),
        grid_spec=pltpu.PrefetchScalarGridSpec(
            num_scalar_prefetch=0,
            grid=(B // bt,),
            in_specs=[
                pl.BlockSpec((bt, C, N), lambda i: (i, 0, 0)),        # x (f32)
                pl.BlockSpec((bt * O, bt * C), lambda i: (0, 0)),     # weights
                pl.BlockSpec((bt * O, 1), lambda i: (0, 0)),          # biases
                pl.BlockSpec((bt * Cq, bt * Cq), lambda i: (0, 0)),   # softmax mask
            ],
            out_specs=pl.BlockSpec((bt, C, N), lambda i: (i, 0, 0)),
        ),
        compiler_params=pltpu.CompilerParams(
            dimension_semantics=("parallel",),
            vmem_limit_bytes=meta["vmem_limit"]),
    )(x_flat, w_big, bias_big, mask)

    return out.reshape(B, C, H, W)


def temporal_attention_ref(x, wq, bq, wk, bk, wv, bv):
    """Pure-JAX reference mirroring the PyTorch TemporalAttention forward."""
    B, C, H, W = x.shape
    N = H * W
    xf = x.reshape(B, C, N)
    q = jnp.einsum('oc,bcn->bon', wq, xf) + bq[None, :, None]
    k = jnp.einsum('oc,bcn->bon', wk, xf) + bk[None, :, None]
    v = jnp.einsum('oc,bcn->bon', wv, xf) + bv[None, :, None]
    query = jnp.transpose(q, (0, 2, 1))                # (B, N, Cq)
    energy = jnp.einsum('bin,bnj->bij', k, query)      # (B, Cq, Cq)
    attn = jax.nn.softmax(energy, axis=-2)             # Softmax(dim=-2)
    out = jnp.einsum('bij,bjn->bin', attn, v)          # (B, C, N)
    return out.reshape(B, C, H, W)


if __name__ == "__main__":
    B, C, H, W = 4, 16, 8, 16          # N = H*W = 128
    Cq = C                             # see TODO(synk): reference uses c_in // 8

    key = jax.random.PRNGKey(0)
    kx, kwq, kbq, kwk, kbk, kwv, kbv = jax.random.split(key, 7)

    x = jax.random.normal(kx, (B, C, H, W), dtype=jnp.float32)

    # Synthetic Conv2d(kernel_size=1) parameters (weights squeezed from
    # (out, in, 1, 1) to (out, in)); scale ~ PyTorch's 1/sqrt(fan_in).
    scale = 1.0 / jnp.sqrt(jnp.float32(C))
    wq = jax.random.uniform(kwq, (Cq, C), jnp.float32, -scale, scale)
    bq = jax.random.uniform(kbq, (Cq,), jnp.float32, -scale, scale)
    wk = jax.random.uniform(kwk, (Cq, C), jnp.float32, -scale, scale)
    bk = jax.random.uniform(kbk, (Cq,), jnp.float32, -scale, scale)
    wv = jax.random.uniform(kwv, (C, C), jnp.float32, -scale, scale)
    bv = jax.random.uniform(kbv, (C,), jnp.float32, -scale, scale)

    ref = temporal_attention_ref(x, wq, bq, wk, bk, wv, bv)

    # Exact path (f32 MXU operands, exact softmax reciprocal): tight check.
    out_f32 = jax.block_until_ready(
        temporal_attention(x, wq, bq, wk, bk, wv, bv,
                           mxu_dtype=jnp.float32, approx_recip=False))
    assert out_f32.shape == (B, C, H, W)
    assert jnp.allclose(out_f32, ref, rtol=1e-4, atol=1e-4), "f32 path mismatch"

    # Fast path (bf16 MXU operands, f32 accumulation + f32 softmax): loose check.
    out_bf16 = jax.block_until_ready(
        temporal_attention(x, wq, bq, wk, bk, wv, bv, mxu_dtype=jnp.bfloat16))
    assert out_bf16.shape == (B, C, H, W)
    rel_err = jnp.max(jnp.abs(out_bf16 - ref)) / (jnp.max(jnp.abs(ref)) + 1e-6)
    assert float(rel_err) < 5e-2, f"bf16 path mismatch (rel_err={float(rel_err)})"

    print("KERNEL_OK")
</pallas_src>

<mosaic_0001>
module attributes {stable_mosaic.version = 11 : i64} {
  func.func @temporal_attention_kernel(%arg0: i32, %arg1: memref<4x16x128xf32, #tpu.memory_space<vmem>>, %arg2: memref<192x64xf32, #tpu.memory_space<vmem>>, %arg3: memref<192x1xf32, #tpu.memory_space<vmem>>, %arg4: memref<64x64xf32, #tpu.memory_space<vmem>>, %arg5: memref<4x16x128xf32, #tpu.memory_space<vmem>>) attributes {dimension_semantics = [#tpu.dimension_semantics<parallel>], iteration_bounds = array<i64: 1>, scalar_prefetch = 0 : i64, scratch_operands = 0 : i64, tpu.core_type = #tpu.core_type<tc>, window_params = [{transform_indices = @transform_0, window_bounds = array<i64: 4, 16, 128>}, {pipeline_mode = #tpu.pipeline_mode<synchronous>, transform_indices = @transform_1, window_bounds = array<i64: 192, 64>}, {pipeline_mode = #tpu.pipeline_mode<synchronous>, transform_indices = @transform_2, window_bounds = array<i64: 192, 1>}, {pipeline_mode = #tpu.pipeline_mode<synchronous>, transform_indices = @transform_3, window_bounds = array<i64: 64, 64>}, {transform_indices = @transform_4, window_bounds = array<i64: 4, 16, 128>}]} {
    %c0 = arith.constant 0 : index
    %c0_0 = arith.constant 0 : index
    %c0_1 = arith.constant 0 : index
    %0 = vector.load %arg1[%c0, %c0_0, %c0_1] : memref<4x16x128xf32, #tpu.memory_space<vmem>>, vector<4x16x128xf32>
    %1 = vector.shape_cast %0 : vector<4x16x128xf32> to vector<64x128xf32>
    %c0_2 = arith.constant 0 : index
    %c0_3 = arith.constant 0 : index
    %2 = vector.load %arg2[%c0_2, %c0_3] : memref<192x64xf32, #tpu.memory_space<vmem>>, vector<192x64xf32>
    %cst = arith.constant dense<0.000000e+00> : vector<192x128xf32>
    %3 = tpu.matmul %2, %1, %cst {dimension_numbers = #tpu.dot_dimension_numbers<[1], [0], [0], [1], [0, 0, 1, 1], [], []>} : vector<192x64xf32>, vector<64x128xf32>, vector<192x128xf32> -> vector<192x128xf32>
    %c0_4 = arith.constant 0 : index
    %c0_5 = arith.constant 0 : index
    %4 = vector.load %arg3[%c0_4, %c0_5] : memref<192x1xf32, #tpu.memory_space<vmem>>, vector<192x1xf32>
    %5 = vector.broadcast %4 : vector<192x1xf32> to vector<192x128xf32>
    %6 = arith.addf %3, %5 : vector<192x128xf32>
    %7 = vector.extract_strided_slice %6 {offsets = [0, 0], sizes = [64, 128], strides = [1, 1]} : vector<192x128xf32> to vector<64x128xf32>
    %8 = vector.extract_strided_slice %6 {offsets = [64, 0], sizes = [64, 128], strides = [1, 1]} : vector<192x128xf32> to vector<64x128xf32>
    %9 = vector.extract_strided_slice %6 {offsets = [128, 0], sizes = [64, 128], strides = [1, 1]} : vector<192x128xf32> to vector<64x128xf32>
    %cst_6 = arith.constant dense<0.000000e+00> : vector<64x64xf32>
    %10 = tpu.matmul %8, %7, %cst_6 {dimension_numbers = #tpu.dot_dimension_numbers<[1], [1], [0], [0], [0, 0, 1, 0], [], []>} : vector<64x128xf32>, vector<64x128xf32>, vector<64x64xf32> -> vector<64x64xf32>
    %c0_7 = arith.constant 0 : index
    %c0_8 = arith.constant 0 : index
    %11 = vector.load %arg4[%c0_7, %c0_8] : memref<64x64xf32, #tpu.memory_space<vmem>>, vector<64x64xf32>
    %12 = arith.addf %10, %11 : vector<64x64xf32>
    %cst_9 = arith.constant dense<0xFF800000> : vector<64xf32>
    %13 = vector.multi_reduction <maximumf>, %12, %cst_9 [0] : vector<64x64xf32> to vector<64xf32>
    %14 = vector.shape_cast %13 : vector<64xf32> to vector<1x64xf32>
    %15 = vector.broadcast %14 : vector<1x64xf32> to vector<64x64xf32>
    %16 = arith.subf %12, %15 : vector<64x64xf32>
    %17 = math.exp %16 : vector<64x64xf32>
    %cst_10 = arith.constant dense<0.000000e+00> : vector<64xf32>
    %18 = vector.multi_reduction <add>, %17, %cst_10 [0] : vector<64x64xf32> to vector<64xf32>
    %19 = vector.shape_cast %18 : vector<64xf32> to vector<1x64xf32>
    %20 = tpu.reciprocal %19 : vector<1x64xf32> -> vector<1x64xf32>
    %21 = vector.broadcast %20 : vector<1x64xf32> to vector<64x64xf32>
    %22 = arith.mulf %17, %21 : vector<64x64xf32>
    %cst_11 = arith.constant dense<0.000000e+00> : vector<64x128xf32>
    %23 = tpu.matmul %22, %9, %cst_11 {dimension_numbers = #tpu.dot_dimension_numbers<[1], [0], [0], [1], [0, 0, 1, 1], [], []>} : vector<64x64xf32>, vector<64x128xf32>, vector<64x128xf32> -> vector<64x128xf32>
    %24 = vector.shape_cast %23 : vector<64x128xf32> to vector<4x16x128xf32>
    %c0_12 = arith.constant 0 : index
    %c0_13 = arith.constant 0 : index
    %c0_14 = arith.constant 0 : index
    %25 = vector.load %arg5[%c0_12, %c0_13, %c0_14] : memref<4x16x128xf32, #tpu.memory_space<vmem>>, vector<4x16x128xf32>
    tpu.vector_store %arg5[%c0_12, %c0_13, %c0_14], %24 {strides = array<i32>} : memref<4x16x128xf32, #tpu.memory_space<vmem>>, vector<4x16x128xf32>,
    return
  }
  func.func @transform_0(%arg0: i32) -> (i32, i32, i32) {
    %c0_i32 = arith.constant 0 : i32
    %c0_i32_0 = arith.constant 0 : i32
    %c0_i32_1 = arith.constant 0 : i32
    return %arg0, %c0_i32, %c0_i32_0 : i32, i32, i32
  }
  func.func @transform_1(%arg0: i32) -> (i32, i32) {
    %c0_i32 = arith.constant 0 : i32
    %c0_i32_0 = arith.constant 0 : i32
    %c0_i32_1 = arith.constant 0 : i32
    return %c0_i32, %c0_i32_0 : i32, i32
  }
  func.func @transform_2(%arg0: i32) -> (i32, i32) {
    %c0_i32 = arith.constant 0 : i32
    %c0_i32_0 = arith.constant 0 : i32
    %c0_i32_1 = arith.constant 0 : i32
    return %c0_i32, %c0_i32_0 : i32, i32
  }
  func.func @transform_3(%arg0: i32) -> (i32, i32) {
    %c0_i32 = arith.constant 0 : i32
    %c0_i32_0 = arith.constant 0 : i32
    %c0_i32_1 = arith.constant 0 : i32
    return %c0_i32, %c0_i32_0 : i32, i32
  }
  func.func @transform_4(%arg0: i32) -> (i32, i32, i32) {
    %c0_i32 = arith.constant 0 : i32
    %c0_i32_0 = arith.constant 0 : i32
    %c0_i32_1 = arith.constant 0 : i32
    return %arg0, %c0_i32, %c0_i32_0 : i32, i32, i32
  }
}

</mosaic_0001>

<llo_original>
// kernel: tpu_custom_call.1
$region0: #{tpu_custom_call.1}
  #allocation0 [shape = 'u32[]', space=smem, size = 0x4, offset = 0x4, fixed_abs, tag = 'smem constant byte address 0x4 - core index']
  #allocation1 [shape = 'u32[144,128]{1,0:T(1,128)}', space=vmem, size = 0x12000, scoped, tag = 'internal scratch']
  %s0 = inlined_call_operand.vmem [shape: f32[4,16,128], index: 0, kind: input, shape index: {}]
  %s1 = inlined_call_operand.vmem [shape: f32[192,64], index: 1, kind: input, shape index: {}]
  %s2 = inlined_call_operand.vmem [shape: f32[192,1], index: 2, kind: input, shape index: {}]
  %s3 = inlined_call_operand.vmem [shape: f32[64,64], index: 3, kind: input, shape index: {}]
  %s4 = inlined_call_operand.hbm [shape: f32[4,16,128], index: 4, kind: output, shape index: {}]
  %s5 = sld [smem:[#allocation0]]
  $region26: #{tpu_custom_call.1} parent=0
    _
  %s7 = ssub.s32 1, %s5
  %s8 = scalar_select 0, %s7, %s5
  $region1: #{tpu_custom_call.1} parent=0
    #allocation2 [shape = 'u8[32768]{0}', space=vmem, size = 0x8000, scoped, tag = 'output window, operand 0, single buffered']
    #allocation3 [shape = 's32[1]{0}', space=sflag, size = 0x4, scoped, tag = 'scoped memory for tpu_custom_call.1']
    %9 = vsyncpa [#allocation3], 0
    // Predicated region
    $region2: #{tpu_custom_call.1} parent=1 // pred_check
      _
    $region3: #{tpu_custom_call.1} parent=1 // pred_check_branch
      %11 = sbr.rel (0) target = $region5
    $region4: #{tpu_custom_call.1} parent=1 // pred_region
      _
    $region5: #{tpu_custom_call.1} parent=1 // pred_fallthru
      _
    // Predicated region
    $region6: #{tpu_custom_call.1} parent=1 // pred_check
      _
    $region7: #{tpu_custom_call.1} parent=1 // pred_check_branch
      %13 = sbr.rel (0) target = $region9
    $region8: #{tpu_custom_call.1} parent=1 // pred_region
      _
    $region9: #{tpu_custom_call.1} parent=1 // pred_fallthru
      _
    // Predicated region
    $region10: #{tpu_custom_call.1} parent=1 // pred_check
      _
    $region11: #{tpu_custom_call.1} parent=1 // pred_check_branch
      %15 = sbr.rel (0) target = $region13
    $region12: #{tpu_custom_call.1} parent=1 // pred_region
      _
    $region13: #{tpu_custom_call.1} parent=1 // pred_fallthru
      _
    // Predicated region
    $region14: #{tpu_custom_call.1} parent=1 // pred_check
      _
    $region15: #{tpu_custom_call.1} parent=1 // pred_check_branch
      %17 = sbr.rel (0) target = $region17
    $region16: #{tpu_custom_call.1} parent=1 // pred_region
      _
    $region17: #{tpu_custom_call.1} parent=1 // pred_fallthru
      _
    %v18 = vld [vmem:[%s0] sm:$0xff]
    %v19 = vld [vmem:[%s0 + $0x8] sm:$0xff]
    %v20 = vld [vmem:[%s0 + $0x10] sm:$0xff]
    %v21 = vld [vmem:[%s0 + $0x18] sm:$0xff]
    %v22 = vld [vmem:[%s0 + $0x20] sm:$0xff]
    %v23 = vld [vmem:[%s0 + $0x28] sm:$0xff]
    %v24 = vld [vmem:[%s0 + $0x30] sm:$0xff]
    %v25 = vld [vmem:[%s0 + $0x38] sm:$0xff]
    %v26 = vld [vmem:[%s1] sm:$0xff]
    %v27 = vld [vmem:[%s1 + $0x8] sm:$0xff]
    %v28 = vld [vmem:[%s1 + $0x10] sm:$0xff]
    %v29 = vld [vmem:[%s1 + $0x18] sm:$0xff]
    %v30 = vld [vmem:[%s1 + $0x20] sm:$0xff]
    %v31 = vld [vmem:[%s1 + $0x28] sm:$0xff]
    %v32 = vld [vmem:[%s1 + $0x30] sm:$0xff]
    %v33 = vld [vmem:[%s1 + $0x38] sm:$0xff]
    %v34 = vld [vmem:[%s1 + $0x40] sm:$0xff]
    %v35 = vld [vmem:[%s1 + $0x48] sm:$0xff]
    %v36 = vld [vmem:[%s1 + $0x50] sm:$0xff]
    %v37 = vld [vmem:[%s1 + $0x58] sm:$0xff]
    %v38 = vld [vmem:[%s1 + $0x60] sm:$0xff]
    %v39 = vld [vmem:[%s1 + $0x68] sm:$0xff]
    %v40 = vld [vmem:[%s1 + $0x70] sm:$0xff]
    %v41 = vld [vmem:[%s1 + $0x78] sm:$0xff]
    %v42 = vld [vmem:[%s1 + $0x80] sm:$0xff]
    %v43 = vld [vmem:[%s1 + $0x88] sm:$0xff]
    %v44 = vld [vmem:[%s1 + $0x90] sm:$0xff]
    %v45 = vld [vmem:[%s1 + $0x98] sm:$0xff]
    %v46 = vld [vmem:[%s1 + $0xa0] sm:$0xff]
    %v47 = vld [vmem:[%s1 + $0xa8] sm:$0xff]
    %v48 = vld [vmem:[%s1 + $0xb0] sm:$0xff]
    %v49 = vld [vmem:[%s1 + $0xb8] sm:$0xff]
    %v50 = vld [vmem:[%s2] sm:$0xff]
    %v51 = vld [vmem:[%s2 + $0x8] sm:$0xff]
    %v52 = vld [vmem:[%s2 + $0x10] sm:$0xff]
    %v53 = vld [vmem:[%s2 + $0x18] sm:$0xff]
    %v54 = vld [vmem:[%s2 + $0x20] sm:$0xff]
    %v55 = vld [vmem:[%s2 + $0x28] sm:$0xff]
    %v56 = vld [vmem:[%s2 + $0x30] sm:$0xff]
    %v57 = vld [vmem:[%s2 + $0x38] sm:$0xff]
    %v58 = vld [vmem:[%s2 + $0x40] sm:$0xff]
    %v59 = vld [vmem:[%s2 + $0x48] sm:$0xff]
    %v60 = vld [vmem:[%s2 + $0x50] sm:$0xff]
    %v61 = vld [vmem:[%s2 + $0x58] sm:$0xff]
    %v62 = vld [vmem:[%s2 + $0x60] sm:$0xff]
    %v63 = vld [vmem:[%s2 + $0x68] sm:$0xff]
    %v64 = vld [vmem:[%s2 + $0x70] sm:$0xff]
    %v65 = vld [vmem:[%s2 + $0x78] sm:$0xff]
    %v66 = vld [vmem:[%s2 + $0x80] sm:$0xff]
    %v67 = vld [vmem:[%s2 + $0x88] sm:$0xff]
    %v68 = vld [vmem:[%s2 + $0x90] sm:$0xff]
    %v69 = vld [vmem:[%s2 + $0x98] sm:$0xff]
    %v70 = vld [vmem:[%s2 + $0xa0] sm:$0xff]
    %v71 = vld [vmem:[%s2 + $0xa8] sm:$0xff]
    %v72 = vld [vmem:[%s2 + $0xb0] sm:$0xff]
    %v73 = vld [vmem:[%s2 + $0xb8] sm:$0xff]
    %75 = vset.pattern.permute.xlu0 0
    %76 = vperm.xlu0 %75, %v50
    %v77 = vpop.permute.xlu0 %76
    %80 = vset.pattern.permute.xlu0 0
    %81 = vperm.xlu0 %80, %v51
    %v82 = vpop.permute.xlu0 %81
    %85 = vset.pattern.permute.xlu0 0
    %86 = vperm.xlu0 %85, %v52
    %v87 = vpop.permute.xlu0 %86
    %90 = vset.pattern.permute.xlu0 0
    %91 = vperm.xlu0 %90, %v53
    %v92 = vpop.permute.xlu0 %91
    %95 = vset.pattern.permute.xlu0 0
    %96 = vperm.xlu0 %95, %v54
    %v97 = vpop.permute.xlu0 %96
    %100 = vset.pattern.permute.xlu0 0
    %101 = vperm.xlu0 %100, %v55
    %v102 = vpop.permute.xlu0 %101
    %105 = vset.pattern.permute.xlu0 0
    %106 = vperm.xlu0 %105, %v56
    %v107 = vpop.permute.xlu0 %106
    %110 = vset.pattern.permute.xlu0 0
    %111 = vperm.xlu0 %110, %v57
    %v112 = vpop.permute.xlu0 %111
    %115 = vset.pattern.permute.xlu0 0
    %116 = vperm.xlu0 %115, %v58
    %v117 = vpop.permute.xlu0 %116
    %120 = vset.pattern.permute.xlu0 0
    %121 = vperm.xlu0 %120, %v59
    %v122 = vpop.permute.xlu0 %121
    %125 = vset.pattern.permute.xlu0 0
    %126 = vperm.xlu0 %125, %v60
    %v127 = vpop.permute.xlu0 %126
    %130 = vset.pattern.permute.xlu0 0
    %131 = vperm.xlu0 %130, %v61
    %v132 = vpop.permute.xlu0 %131
    %135 = vset.pattern.permute.xlu0 0
    %136 = vperm.xlu0 %135, %v62
    %v137 = vpop.permute.xlu0 %136
    %140 = vset.pattern.permute.xlu0 0
    %141 = vperm.xlu0 %140, %v63
    %v142 = vpop.permute.xlu0 %141
    %145 = vset.pattern.permute.xlu0 0
    %146 = vperm.xlu0 %145, %v64
    %v147 = vpop.permute.xlu0 %146
    %150 = vset.pattern.permute.xlu0 0
    %151 = vperm.xlu0 %150, %v65
    %v152 = vpop.permute.xlu0 %151
    %155 = vset.pattern.permute.xlu0 0
    %156 = vperm.xlu0 %155, %v66
    %v157 = vpop.permute.xlu0 %156
    %160 = vset.pattern.permute.xlu0 0
    %161 = vperm.xlu0 %160, %v67
    %v162 = vpop.permute.xlu0 %161
    %165 = vset.pattern.permute.xlu0 0
    %166 = vperm.xlu0 %165, %v68
    %v167 = vpop.permute.xlu0 %166
    %170 = vset.pattern.permute.xlu0 0
    %171 = vperm.xlu0 %170, %v69
    %v172 = vpop.permute.xlu0 %171
    %175 = vset.pattern.permute.xlu0 0
    %176 = vperm.xlu0 %175, %v70
    %v177 = vpop.permute.xlu0 %176
    %180 = vset.pattern.permute.xlu0 0
    %181 = vperm.xlu0 %180, %v71
    %v182 = vpop.permute.xlu0 %181
    %185 = vset.pattern.permute.xlu0 0
    %186 = vperm.xlu0 %185, %v72
    %v187 = vpop.permute.xlu0 %186
    %190 = vset.pattern.permute.xlu0 0
    %191 = vperm.xlu0 %190, %v73
    %v192 = vpop.permute.xlu0 %191
    %vm194 = vcmask 523264
    %v196 = vsel %vm194, %v26, 0
    %v199 = vsel %vm194, %v27, 0
    %v202 = vsel %vm194, %v28, 0
    %v205 = vsel %vm194, %v29, 0
    %v208 = vsel %vm194, %v30, 0
    %v211 = vsel %vm194, %v31, 0
    %v214 = vsel %vm194, %v32, 0
    %v217 = vsel %vm194, %v33, 0
    %v220 = vsel %vm194, %v34, 0
    %v223 = vsel %vm194, %v35, 0
    %v226 = vsel %vm194, %v36, 0
    %v229 = vsel %vm194, %v37, 0
    %v232 = vsel %vm194, %v38, 0
    %v235 = vsel %vm194, %v39, 0
    %v238 = vsel %vm194, %v40, 0
    %v241 = vsel %vm194, %v41, 0
    %v244 = vsel %vm194, %v42, 0
    %v247 = vsel %vm194, %v43, 0
    %v250 = vsel %vm194, %v44, 0
    %v253 = vsel %vm194, %v45, 0
    %v256 = vsel %vm194, %v46, 0
    %v259 = vsel %vm194, %v47, 0
    %v262 = vsel %vm194, %v48, 0
    %v265 = vsel %vm194, %v49, 0
    %267 = vmatprep.subr.mxu0 0.0
    %268 = vmatpush1.msra.mxu0 0.0
    %269 = vmatprep.subr.mxu0 0.0
    %270 = vmatpush1.msra.mxu0 0.0
    %271 = vmatprep.subr.mxu0 0.0
    %272 = vmatpush1.msra.mxu0 0.0
    %273 = vmatprep.subr.mxu0 0.0
    %274 = vmatpush1.msra.mxu0 0.0
    %275 = vmatprep.subr.mxu0 0.0
    %276 = vmatpush1.msra.mxu0 0.0
    %277 = vmatprep.subr.mxu0 0.0
    %278 = vmatpush1.msra.mxu0 0.0
    %279 = vmatprep.subr.mxu0 0.0
    %280 = vmatpush1.msra.mxu0 0.0
    %281 = vmatprep.subr.mxu0 0.0
    %282 = vmatpush1.msra.mxu0 0.0
    %283 = vmatprep.subr.mxu0 0.0
    %284 = vmatpush1.msra.mxu0 %v25
    %285 = vmatprep.subr.mxu0 0.0
    %286 = vmatpush1.msra.mxu0 %v24
    %287 = vmatprep.subr.mxu0 0.0
    %288 = vmatpush1.msra.mxu0 %v23
    %289 = vmatprep.subr.mxu0 0.0
    %290 = vmatpush1.msra.mxu0 %v22
    %291 = vmatprep.subr.mxu0 0.0
    %292 = vmatpush1.msra.mxu0 %v21
    %293 = vmatprep.subr.mxu0 0.0
    %294 = vmatpush1.msra.mxu0 %v20
    %295 = vmatprep.subr.mxu0 0.0
    %296 = vmatpush1.msra.mxu0 %v19
    %297 = vmatprep.subr.mxu0 0.0
    %298 = vmatpush1.msra.mxu0 %v18
    %299 = vmatprep.subr.mxu0 0.0
    %300 = vmatpush2.msra.mxu0 0.0
    %301 = vmatprep.subr.mxu0 0.0
    %302 = vmatpush2.msra.mxu0 0.0
    %303 = vmatprep.subr.mxu0 0.0
    %304 = vmatpush2.msra.mxu0 0.0
    %305 = vmatprep.subr.mxu0 0.0
    %306 = vmatpush2.msra.mxu0 0.0
    %307 = vmatprep.subr.mxu0 0.0
    %308 = vmatpush2.msra.mxu0 0.0
    %309 = vmatprep.subr.mxu0 0.0
    %310 = vmatpush2.msra.mxu0 0.0
    %311 = vmatprep.subr.mxu0 0.0
    %312 = vmatpush2.msra.mxu0 0.0
    %313 = vmatprep.subr.mxu0 0.0
    %314 = vmatpush2.msra.mxu0 0.0
    %315 = vmatprep.subr.mxu0 0.0
    %316 = vmatpush2.msra.mxu0 0.0
    %317 = vmatprep.subr.mxu0 0.0
    %318 = vmatpush2.msra.mxu0 0.0
    %319 = vmatprep.subr.mxu0 0.0
    %320 = vmatpush2.msra.mxu0 0.0
    %321 = vmatprep.subr.mxu0 0.0
    %322 = vmatpush2.msra.mxu0 0.0
    %323 = vmatprep.subr.mxu0 0.0
    %324 = vmatpush2.msra.mxu0 0.0
    %325 = vmatprep.subr.mxu0 0.0
    %326 = vmatpush2.msra.mxu0 0.0
    %327 = vmatprep.subr.mxu0 0.0
    %328 = vmatpush2.msra.mxu0 0.0
    %329 = vmatprep.subr.mxu0 0.0
    %330 = vmatpush2.msra.mxu0 0.0
    %331 = vmatprep.mubr.f32.mxu0 0.0
    %332 = vmatmul.mubr.f32.gmra.mxu0 %v196
    %v333 = vpop.f32.mrf.mxu0
    %v334 = vadd.f32 %v77, %v333
    %v335 = vpop.f32.mrf.mxu0
    %336 = vmatprep.mubr.f32.mxu0 0.0
    %337 = vmatmul.mubr.f32.gmra.mxu0 %v199
    %v338 = vpop.f32.mrf.mxu0
    %v339 = vadd.f32 %v82, %v338
    %v340 = vpop.f32.mrf.mxu0
    %341 = vmatprep.mubr.f32.mxu0 0.0
    %342 = vmatmul.mubr.f32.gmra.mxu0 %v202
    %v343 = vpop.f32.mrf.mxu0
    %v344 = vadd.f32 %v87, %v343
    %v345 = vpop.f32.mrf.mxu0
    %346 = vmatprep.mubr.f32.mxu0 0.0
    %347 = vmatmul.mubr.f32.gmra.mxu0 %v205
    %v348 = vpop.f32.mrf.mxu0
    %v349 = vadd.f32 %v92, %v348
    %v350 = vpop.f32.mrf.mxu0
    %351 = vmatprep.mubr.f32.mxu0 0.0
    %352 = vmatmul.mubr.f32.gmra.mxu0 %v208
    %v353 = vpop.f32.mrf.mxu0
    %v354 = vadd.f32 %v97, %v353
    %v355 = vpop.f32.mrf.mxu0
    %356 = vmatprep.mubr.f32.mxu0 0.0
    %357 = vmatmul.mubr.f32.gmra.mxu0 %v211
    %v358 = vpop.f32.mrf.mxu0
    %v359 = vadd.f32 %v102, %v358
    %v360 = vpop.f32.mrf.mxu0
    %361 = vmatprep.mubr.f32.mxu0 0.0
    %362 = vmatmul.mubr.f32.gmra.mxu0 %v214
    %v363 = vpop.f32.mrf.mxu0
    %v364 = vadd.f32 %v107, %v363
    %v365 = vpop.f32.mrf.mxu0
    %366 = vmatprep.mubr.f32.mxu0 0.0
    %367 = vmatmul.mubr.f32.gmra.mxu0 %v217
    %v368 = vpop.f32.mrf.mxu0
    %v369 = vadd.f32 %v112, %v368
    %v370 = vpop.f32.mrf.mxu0
    %371 = vmatprep.mubr.f32.mxu0 0.0
    %372 = vmatmul.mubr.f32.gmra.mxu0 %v220
    %v373 = vpop.f32.mrf.mxu0
    %v374 = vadd.f32 %v117, %v373
    %v375 = vpop.f32.mrf.mxu0
    %376 = vmatprep.mubr.f32.mxu0 0.0
    %377 = vmatmul.mubr.f32.gmra.mxu0 %v223
    %v378 = vpop.f32.mrf.mxu0
    %v379 = vadd.f32 %v122, %v378
    %v380 = vpop.f32.mrf.mxu0
    %381 = vmatprep.mubr.f32.mxu0 0.0
    %382 = vmatmul.mubr.f32.gmra.mxu0 %v226
    %v383 = vpop.f32.mrf.mxu0
    %v384 = vadd.f32 %v127, %v383
    %v385 = vpop.f32.mrf.mxu0
    %386 = vmatprep.mubr.f32.mxu0 0.0
    %387 = vmatmul.mubr.f32.gmra.mxu0 %v229
    %v388 = vpop.f32.mrf.mxu0
    %v389 = vadd.f32 %v132, %v388
    %v390 = vpop.f32.mrf.mxu0
    %391 = vmatprep.mubr.f32.mxu0 0.0
    %392 = vmatmul.mubr.f32.gmra.mxu0 %v232
    %v393 = vpop.f32.mrf.mxu0
    %v394 = vadd.f32 %v137, %v393
    %v395 = vpop.f32.mrf.mxu0
    %396 = vmatprep.mubr.f32.mxu0 0.0
    %397 = vmatmul.mubr.f32.gmra.mxu0 %v235
    %v398 = vpop.f32.mrf.mxu0
    %v399 = vadd.f32 %v142, %v398
    %v400 = vpop.f32.mrf.mxu0
    %401 = vmatprep.mubr.f32.mxu0 0.0
    %402 = vmatmul.mubr.f32.gmra.mxu0 %v238
    %v403 = vpop.f32.mrf.mxu0
    %v404 = vadd.f32 %v147, %v403
    %v405 = vpop.f32.mrf.mxu0
    %406 = vmatprep.mubr.f32.mxu0 0.0
    %407 = vmatmul.mubr.f32.gmra.mxu0 %v241
    %v408 = vpop.f32.mrf.mxu0
    %v409 = vadd.f32 %v152, %v408
    %v410 = vpop.f32.mrf.mxu0
    %411 = vmatprep.mubr.f32.mxu0 0.0
    %412 = vmatmul.mubr.f32.gmra.mxu0 %v244
    %v413 = vpop.f32.mrf.mxu0
    %v414 = vadd.f32 %v157, %v413
    %v415 = vpop.f32.mrf.mxu0
    %416 = vmatprep.mubr.f32.mxu0 0.0
    %417 = vmatmul.mubr.f32.gmra.mxu0 %v247
    %v418 = vpop.f32.mrf.mxu0
    %v419 = vadd.f32 %v162, %v418
    %v420 = vpop.f32.mrf.mxu0
    %421 = vmatprep.mubr.f32.mxu0 0.0
    %422 = vmatmul.mubr.f32.gmra.mxu0 %v250
    %v423 = vpop.f32.mrf.mxu0
    %v424 = vadd.f32 %v167, %v423
    %v425 = vpop.f32.mrf.mxu0
    %426 = vmatprep.mubr.f32.mxu0 0.0
    %427 = vmatmul.mubr.f32.gmra.mxu0 %v253
    %v428 = vpop.f32.mrf.mxu0
    %v429 = vadd.f32 %v172, %v428
    %v430 = vpop.f32.mrf.mxu0
    %431 = vmatprep.mubr.f32.mxu0 0.0
    %432 = vmatmul.mubr.f32.gmra.mxu0 %v256
    %v433 = vpop.f32.mrf.mxu0
    %v434 = vadd.f32 %v177, %v433
    %v435 = vpop.f32.mrf.mxu0
    %436 = vmatprep.mubr.f32.mxu0 0.0
    %437 = vmatmul.mubr.f32.gmra.mxu0 %v259
    %v438 = vpop.f32.mrf.mxu0
    %v439 = vadd.f32 %v182, %v438
    %v440 = vpop.f32.mrf.mxu0
    %441 = vmatprep.mubr.f32.mxu0 0.0
    %442 = vmatmul.mubr.f32.gmra.mxu0 %v262
    %v443 = vpop.f32.mrf.mxu0
    %v444 = vadd.f32 %v187, %v443
    %v445 = vpop.f32.mrf.mxu0
    %446 = vmatprep.mubr.f32.mxu0 0.0
    %447 = vmatmul.mubr.f32.gmra.mxu0 %v265
    %v448 = vpop.f32.mrf.mxu0
    %v449 = vadd.f32 %v192, %v448
    %v450 = vpop.f32.mrf.mxu0
    %451 = vdwg.mxu0
    %v452 = vld [vmem:[%s3] sm:$0xff]
    %v453 = vld [vmem:[%s3 + $0x8] sm:$0xff]
    %v454 = vld [vmem:[%s3 + $0x10] sm:$0xff]
    %v455 = vld [vmem:[%s3 + $0x18] sm:$0xff]
    %v456 = vld [vmem:[%s3 + $0x20] sm:$0xff]
    %v457 = vld [vmem:[%s3 + $0x28] sm:$0xff]
    %v458 = vld [vmem:[%s3 + $0x30] sm:$0xff]
    %v459 = vld [vmem:[%s3 + $0x38] sm:$0xff]
    %460 = vmatprep.subr.mxu0 0.0
    %461 = vmatpush1.xpose.msra.mxu0 0.0
    %462 = vmatprep.subr.mxu0 0.0
    %463 = vmatpush1.xpose.msra.mxu0 0.0
    %464 = vmatprep.subr.mxu0 0.0
    %465 = vmatpush1.xpose.msra.mxu0 0.0
    %466 = vmatprep.subr.mxu0 0.0
    %467 = vmatpush1.xpose.msra.mxu0 0.0
    %468 = vmatprep.subr.mxu0 0.0
    %469 = vmatpush1.xpose.msra.mxu0 0.0
    %470 = vmatprep.subr.mxu0 0.0
    %471 = vmatpush1.xpose.msra.mxu0 0.0
    %472 = vmatprep.subr.mxu0 0.0
    %473 = vmatpush1.xpose.msra.mxu0 0.0
    %474 = vmatprep.subr.mxu0 0.0
    %475 = vmatpush1.xpose.msra.mxu0 0.0
    %476 = vmatprep.subr.mxu0 0.0
    %477 = vmatpush1.xpose.msra.mxu0 %v369
    %478 = vmatprep.subr.mxu0 0.0
    %479 = vmatpush1.xpose.msra.mxu0 %v364
    %480 = vmatprep.subr.mxu0 0.0
    %481 = vmatpush1.xpose.msra.mxu0 %v359
    %482 = vmatprep.subr.mxu0 0.0
    %483 = vmatpush1.xpose.msra.mxu0 %v354
    %484 = vmatprep.subr.mxu0 0.0
    %485 = vmatpush1.xpose.msra.mxu0 %v349
    %486 = vmatprep.subr.mxu0 0.0
    %487 = vmatpush1.xpose.msra.mxu0 %v344
    %488 = vmatprep.subr.mxu0 0.0
    %489 = vmatpush1.xpose.msra.mxu0 %v339
    %490 = vmatprep.subr.mxu0 0.0
    %491 = vmatpush1.xpose.msra.mxu0 %v334
    %492 = vmatprep.subr.mxu0 0.0
    %493 = vmatpush2.xpose.msra.mxu0 0.0
    %494 = vmatprep.subr.mxu0 0.0
    %495 = vmatpush2.xpose.msra.mxu0 0.0
    %496 = vmatprep.subr.mxu0 0.0
    %497 = vmatpush2.xpose.msra.mxu0 0.0
    %498 = vmatprep.subr.mxu0 0.0
    %499 = vmatpush2.xpose.msra.mxu0 0.0
    %500 = vmatprep.subr.mxu0 0.0
    %501 = vmatpush2.xpose.msra.mxu0 0.0
    %502 = vmatprep.subr.mxu0 0.0
    %503 = vmatpush2.xpose.msra.mxu0 0.0
    %504 = vmatprep.subr.mxu0 0.0
    %505 = vmatpush2.xpose.msra.mxu0 0.0
    %506 = vmatprep.subr.mxu0 0.0
    %507 = vmatpush2.xpose.msra.mxu0 0.0
    %508 = vmatprep.subr.mxu0 0.0
    %509 = vmatpush2.xpose.msra.mxu0 0.0
    %510 = vmatprep.subr.mxu0 0.0
    %511 = vmatpush2.xpose.msra.mxu0 0.0
    %512 = vmatprep.subr.mxu0 0.0
    %513 = vmatpush2.xpose.msra.mxu0 0.0
    %514 = vmatprep.subr.mxu0 0.0
    %515 = vmatpush2.xpose.msra.mxu0 0.0
    %516 = vmatprep.subr.mxu0 0.0
    %517 = vmatpush2.xpose.msra.mxu0 0.0
    %518 = vmatprep.subr.mxu0 0.0
    %519 = vmatpush2.xpose.msra.mxu0 0.0
    %520 = vmatprep.subr.mxu0 0.0
    %521 = vmatpush2.xpose.msra.mxu0 0.0
    %522 = vmatprep.subr.mxu0 0.0
    %523 = vmatpush2.xpose.msra.mxu0 0.0
    %524 = vmatprep.mubr.f32.mxu0 0.0
    %525 = vmatmul.mubr.f32.gmra.mxu0 %v374
    %v526 = vpop.f32.mrf.mxu0
    %v527 = vadd.f32 %v452, %v526
    %v528 = vpop.f32.mrf.mxu0
    %529 = vmatprep.mubr.f32.mxu0 0.0
    %530 = vmatmul.mubr.f32.gmra.mxu0 %v379
    %v531 = vpop.f32.mrf.mxu0
    %v532 = vadd.f32 %v453, %v531
    %v533 = vpop.f32.mrf.mxu0
    %534 = vmatprep.mubr.f32.mxu0 0.0
    %535 = vmatmul.mubr.f32.gmra.mxu0 %v384
    %v536 = vpop.f32.mrf.mxu0
    %v537 = vadd.f32 %v454, %v536
    %v538 = vpop.f32.mrf.mxu0
    %539 = vmatprep.mubr.f32.mxu0 0.0
    %540 = vmatmul.mubr.f32.gmra.mxu0 %v389
    %v541 = vpop.f32.mrf.mxu0
    %v542 = vadd.f32 %v455, %v541
    %v543 = vpop.f32.mrf.mxu0
    %544 = vmatprep.mubr.f32.mxu0 0.0
    %545 = vmatmul.mubr.f32.gmra.mxu0 %v394
    %v546 = vpop.f32.mrf.mxu0
    %v547 = vadd.f32 %v456, %v546
    %v548 = vpop.f32.mrf.mxu0
    %549 = vmatprep.mubr.f32.mxu0 0.0
    %550 = vmatmul.mubr.f32.gmra.mxu0 %v399
    %v551 = vpop.f32.mrf.mxu0
    %v552 = vadd.f32 %v457, %v551
    %v553 = vpop.f32.mrf.mxu0
    %554 = vmatprep.mubr.f32.mxu0 0.0
    %555 = vmatmul.mubr.f32.gmra.mxu0 %v404
    %v556 = vpop.f32.mrf.mxu0
    %v557 = vadd.f32 %v458, %v556
    %v558 = vpop.f32.mrf.mxu0
    %559 = vmatprep.mubr.f32.mxu0 0.0
    %560 = vmatmul.mubr.f32.gmra.mxu0 %v409
    %v561 = vpop.f32.mrf.mxu0
    %v562 = vadd.f32 %v459, %v561
    %v563 = vpop.f32.mrf.mxu0
    %564 = vdwg.mxu0
    %v565 = vsel %vm194, %v527, -inf
    %v566 = vsel %vm194, %v532, -inf
    %v567 = vsel %vm194, %v537, -inf
    %v568 = vsel %vm194, %v542, -inf
    %v569 = vsel %vm194, %v547, -inf
    %v570 = vmax.f32 %v565, %v569
    %v571 = vsel %vm194, %v552, -inf
    %v572 = vmax.f32 %v566, %v571
    %v573 = vsel %vm194, %v557, -inf
    %v574 = vmax.f32 %v567, %v573
    %v575 = vsel %vm194, %v562, -inf
    %v576 = vmax.f32 %v568, %v575
    %v577 = vmax.f32 %v570, %v572
    %v578 = vmax.f32 %v574, %v576
    %v579 = vmax.f32 %v577, %v578
    %v580 = vrot.slane %v579, 4
    %v581 = vmax.f32 %v579, %v580
    %v582 = vrot.slane %v581, 2
    %v583 = vmax.f32 %v581, %v582
    %v584 = vrot.slane %v583, 1
    %v585 = vmax.f32 %v583, %v584
    %v586 = vsub.f32 %v527, %v585
    %v587 = vsub.f32 %v532, %v585
    %v588 = vsub.f32 %v537, %v585
    %v589 = vsub.f32 %v542, %v585
    %v590 = vsub.f32 %v547, %v585
    %v591 = vsub.f32 %v552, %v585
    %v592 = vsub.f32 %v557, %v585
    %v593 = vsub.f32 %v562, %v585
    %v594 = vmul.f32 %v586, 1.442695
    %v595 = vpow.pop %v594
    %v596 = vmul.f32 %v587, 1.442695
    %v597 = vpow.pop %v596
    %v598 = vmul.f32 %v588, 1.442695
    %v599 = vpow.pop %v598
    %v600 = vmul.f32 %v589, 1.442695
    %v601 = vpow.pop %v600
    %v602 = vmul.f32 %v590, 1.442695
    %v603 = vpow.pop %v602
    %v604 = vmul.f32 %v591, 1.442695
    %v605 = vpow.pop %v604
    %v606 = vmul.f32 %v592, 1.442695
    %v607 = vpow.pop %v606
    %v608 = vmul.f32 %v593, 1.442695
    %v609 = vpow.pop %v608
    %v610 = vsel %vm194, %v595, 0.0
    %v611 = vsel %vm194, %v597, 0.0
    %v612 = vadd.f32 %v610, %v611
    %v613 = vsel %vm194, %v599, 0.0
    %v614 = vadd.f32 %v612, %v613
    %v615 = vsel %vm194, %v601, 0.0
    %v616 = vadd.f32 %v614, %v615
    %v617 = vsel %vm194, %v603, 0.0
    %v618 = vadd.f32 %v616, %v617
    %v619 = vsel %vm194, %v605, 0.0
    %v620 = vadd.f32 %v618, %v619
    %v621 = vsel %vm194, %v607, 0.0
    %v622 = vadd.f32 %v620, %v621
    %v623 = vsel %vm194, %v609, 0.0
    %v624 = vadd.f32 %v622, %v623
    %v625 = vrot.slane %v624, 4
    %v626 = vadd.f32 %v624, %v625
    %v627 = vrot.slane %v626, 2
    %v628 = vadd.f32 %v626, %v627
    %v629 = vrot.slane %v628, 1
    %v630 = vadd.f32 %v628, %v629
    %v631 = vrcp.pop %v630
    %v632 = vmul.f32 %v595, %v631
    %v633 = vmul.f32 %v597, %v631
    %v634 = vmul.f32 %v599, %v631
    %v635 = vmul.f32 %v601, %v631
    %v636 = vmul.f32 %v603, %v631
    %v637 = vmul.f32 %v605, %v631
    %v638 = vmul.f32 %v607, %v631
    %v639 = vmul.f32 %v609, %v631
    %v641 = vsel %vm194, %v632, 0
    %v644 = vsel %vm194, %v633, 0
    %v647 = vsel %vm194, %v634, 0
    %v650 = vsel %vm194, %v635, 0
    %v653 = vsel %vm194, %v636, 0
    %v656 = vsel %vm194, %v637, 0
    %v659 = vsel %vm194, %v638, 0
    %v662 = vsel %vm194, %v639, 0
    %664 = vmatprep.subr.mxu0 0.0
    %665 = vmatpush1.msra.mxu0 0.0
    %666 = vmatprep.subr.mxu0 0.0
    %667 = vmatpush1.msra.mxu0 0.0
    %668 = vmatprep.subr.mxu0 0.0
    %669 = vmatpush1.msra.mxu0 0.0
    %670 = vmatprep.subr.mxu0 0.0
    %671 = vmatpush1.msra.mxu0 0.0
    %672 = vmatprep.subr.mxu0 0.0
    %673 = vmatpush1.msra.mxu0 0.0
    %674 = vmatprep.subr.mxu0 0.0
    %675 = vmatpush1.msra.mxu0 0.0
    %676 = vmatprep.subr.mxu0 0.0
    %677 = vmatpush1.msra.mxu0 0.0
    %678 = vmatprep.subr.mxu0 0.0
    %679 = vmatpush1.msra.mxu0 0.0
    %680 = vmatprep.subr.mxu0 0.0
    %681 = vmatpush1.msra.mxu0 %v449
    %682 = vmatprep.subr.mxu0 0.0
    %683 = vmatpush1.msra.mxu0 %v444
    %684 = vmatprep.subr.mxu0 0.0
    %685 = vmatpush1.msra.mxu0 %v439
    %686 = vmatprep.subr.mxu0 0.0
    %687 = vmatpush1.msra.mxu0 %v434
    %688 = vmatprep.subr.mxu0 0.0
    %689 = vmatpush1.msra.mxu0 %v429
    %690 = vmatprep.subr.mxu0 0.0
    %691 = vmatpush1.msra.mxu0 %v424
    %692 = vmatprep.subr.mxu0 0.0
    %693 = vmatpush1.msra.mxu0 %v419
    %694 = vmatprep.subr.mxu0 0.0
    %695 = vmatpush1.msra.mxu0 %v414
    %696 = vmatprep.subr.mxu0 0.0
    %697 = vmatpush2.msra.mxu0 0.0
    %698 = vmatprep.subr.mxu0 0.0
    %699 = vmatpush2.msra.mxu0 0.0
    %700 = vmatprep.subr.mxu0 0.0
    %701 = vmatpush2.msra.mxu0 0.0
    %702 = vmatprep.subr.mxu0 0.0
    %703 = vmatpush2.msra.mxu0 0.0
    %704 = vmatprep.subr.mxu0 0.0
    %705 = vmatpush2.msra.mxu0 0.0
    %706 = vmatprep.subr.mxu0 0.0
    %707 = vmatpush2.msra.mxu0 0.0
    %708 = vmatprep.subr.mxu0 0.0
    %709 = vmatpush2.msra.mxu0 0.0
    %710 = vmatprep.subr.mxu0 0.0
    %711 = vmatpush2.msra.mxu0 0.0
    %712 = vmatprep.subr.mxu0 0.0
    %713 = vmatpush2.msra.mxu0 0.0
    %714 = vmatprep.subr.mxu0 0.0
    %715 = vmatpush2.msra.mxu0 0.0
    %716 = vmatprep.subr.mxu0 0.0
    %717 = vmatpush2.msra.mxu0 0.0
    %718 = vmatprep.subr.mxu0 0.0
    %719 = vmatpush2.msra.mxu0 0.0
    %720 = vmatprep.subr.mxu0 0.0
    %721 = vmatpush2.msra.mxu0 0.0
    %722 = vmatprep.subr.mxu0 0.0
    %723 = vmatpush2.msra.mxu0 0.0
    %724 = vmatprep.subr.mxu0 0.0
    %725 = vmatpush2.msra.mxu0 0.0
    %726 = vmatprep.subr.mxu0 0.0
    %727 = vmatpush2.msra.mxu0 0.0
    %728 = vmatprep.mubr.f32.mxu0 0.0
    %729 = vmatmul.mubr.f32.gmra.mxu0 %v641
    %v730 = vpop.f32.mrf.mxu0
    %v731 = vadd.f32 0.0, %v730
    %v732 = vpop.f32.mrf.mxu0
    %733 = vmatprep.mubr.f32.mxu0 0.0
    %734 = vmatmul.mubr.f32.gmra.mxu0 %v644
    %v735 = vpop.f32.mrf.mxu0
    %v736 = vadd.f32 0.0, %v735
    %v737 = vpop.f32.mrf.mxu0
    %738 = vmatprep.mubr.f32.mxu0 0.0
    %739 = vmatmul.mubr.f32.gmra.mxu0 %v647
    %v740 = vpop.f32.mrf.mxu0
    %v741 = vadd.f32 0.0, %v740
    %v742 = vpop.f32.mrf.mxu0
    %743 = vmatprep.mubr.f32.mxu0 0.0
    %744 = vmatmul.mubr.f32.gmra.mxu0 %v650
    %v745 = vpop.f32.mrf.mxu0
    %v746 = vadd.f32 0.0, %v745
    %v747 = vpop.f32.mrf.mxu0
    %748 = vmatprep.mubr.f32.mxu0 0.0
    %749 = vmatmul.mubr.f32.gmra.mxu0 %v653
    %v750 = vpop.f32.mrf.mxu0
    %v751 = vadd.f32 0.0, %v750
    %v752 = vpop.f32.mrf.mxu0
    %753 = vmatprep.mubr.f32.mxu0 0.0
    %754 = vmatmul.mubr.f32.gmra.mxu0 %v656
    %v755 = vpop.f32.mrf.mxu0
    %v756 = vadd.f32 0.0, %v755
    %v757 = vpop.f32.mrf.mxu0
    %758 = vmatprep.mubr.f32.mxu0 0.0
    %759 = vmatmul.mubr.f32.gmra.mxu0 %v659
    %v760 = vpop.f32.mrf.mxu0
    %v761 = vadd.f32 0.0, %v760
    %v762 = vpop.f32.mrf.mxu0
    %763 = vmatprep.mubr.f32.mxu0 0.0
    %764 = vmatmul.mubr.f32.gmra.mxu0 %v662
    %v765 = vpop.f32.mrf.mxu0
    %v766 = vadd.f32 0.0, %v765
    %v767 = vpop.f32.mrf.mxu0
    %768 = vdwg.mxu0
    %769 = vst [vmem:[#allocation2] sm:$0xff] %v731
    %770 = vst [vmem:[#allocation2 + $0x8] sm:$0xff] %v736
    %771 = vst [vmem:[#allocation2 + $0x10] sm:$0xff] %v741
    %772 = vst [vmem:[#allocation2 + $0x18] sm:$0xff] %v746
    %773 = vst [vmem:[#allocation2 + $0x20] sm:$0xff] %v751
    %774 = vst [vmem:[#allocation2 + $0x28] sm:$0xff] %v756
    %775 = vst [vmem:[#allocation2 + $0x30] sm:$0xff] %v761
    %776 = vst [vmem:[#allocation2 + $0x38] sm:$0xff] %v766
    // Predicated region
    $region18: #{tpu_custom_call.1} parent=1 // pred_check
      _
    $region19: #{tpu_custom_call.1} parent=1 // pred_check_branch
      %778 = sbr.rel (0) target = $region21
    $region20: #{tpu_custom_call.1} parent=1 // pred_region
      %s780 = ssub.s32 1024, 1024
      %781 = vsyncadd [#allocation3], %s780
      %s782 = sshll.u32 [#allocation2], 4
      %s783 = int_to_ptr.vmem [resolvable:$true] %s782
      %788 = dma.vmem_to_hbm [thread:$0]  %s783, 1024, %s4, [#allocation3], 128, 128, 8
    $region21: #{tpu_custom_call.1} parent=1 // pred_fallthru
      _
    // Predicated region
    $region22: #{tpu_custom_call.1} parent=1 // pred_check
      _
    $region23: #{tpu_custom_call.1} parent=1 // pred_check_branch
      %790 = sbr.rel (0) target = $region25
    $region24: #{tpu_custom_call.1} parent=1 // pred_region
      %791 = dma.done [#allocation3], 1024
    $region25: #{tpu_custom_call.1} parent=1 // pred_fallthru
      _
    %792 = vsyncpa [#allocation3], 1

</llo_original>
